<compile_context>
chip_gen: v7x
topology: tpu7x:2x2x1
jax: 0.10.0
libtpu: 0.0.40
codegen_flags: <defaults>
</compile_context>

<pallas_src>
import jax
import jax.numpy as jnp
from jax.experimental import pallas as pl
from jax.experimental.pallas import tpu as pltpu


def _scale_shift_expand_kernel(x_ref, o_ref):
    # x_ref: (B_N, 1, T) VMEM tile; o_ref: (B_N, 3, T) VMEM tile.
    y = x_ref[...] * 0.5 + 0.5          # VPU elementwise, shape (B_N, 1, T)
    # Three explicit channel writes from the same vregs (no 3x broadcast).
    o_ref[:, 0:1, :] = y
    o_ref[:, 1:2, :] = y
    o_ref[:, 2:3, :] = y


def _choose_tiling(n, hw, dsize,
                   target_out_bytes=2 << 20,     # ~2 MiB output / step
                   vmem_safe_bytes=12 << 20):    # safe under v5e 16 MiB scoped
    """Pick (batch_block, spatial_tile) for the [N,1,HW] -> [N,3,HW] kernel.

    Prefers T == HW (one contiguous output slab per step) and blocks over the
    batch dim to reach ~target_out_bytes per step; only tiles the lane axis
    when a single full-spatial row overflows the conservative VMEM budget.
    """
    row_out_bytes = 3 * hw * dsize          # output bytes of one batch row
    row_total_bytes = 4 * hw * dsize        # in + 3x out of one batch row

    if 2 * row_total_bytes <= vmem_safe_bytes:
        # Full-spatial blocks; batch-block toward the per-step byte target.
        t = hw
        bn = max(1, target_out_bytes // max(1, row_out_bytes))
        bn_vmem_cap = max(1, vmem_safe_bytes // (2 * row_total_bytes))
        bn = min(bn, bn_vmem_cap, n)
        # Keep >= 2 grid steps when there are >= 2 batch rows (v7x: 2 TCs).
        if n >= 2 and bn >= n:
            bn = (n + 1) // 2
        return int(bn), int(t)

    # Spatial dim too large for full-row blocks: tile the lane axis.
    # T is a multiple of 128; pl.cdiv grid handles the ragged last block.
    max_t_vmem = vmem_safe_bytes // (2 * 4 * dsize)
    want_t = max(128, target_out_bytes // (3 * dsize))
    t = min(max_t_vmem, want_t, hw)
    t = max(128, (t // 128) * 128)
    return 1, int(t)


def robustbench_classifier_inputs(x):
    """JAX/Pallas equivalent of (x / 2 + 0.5).expand([-1, 3, -1, -1]).

    x: [N, 1, H, W] (f32 / bf16 / f16) -> [N, 3, H, W], same dtype as x.
    """
    N, C, H, W = x.shape
    assert C == 1, "expand to 3 channels requires a singleton channel dim"
    if x.dtype == jnp.float64:
        raise TypeError("float64 is not supported by Pallas TPU; cast to float32 first")
    assert jnp.issubdtype(x.dtype, jnp.floating), (
        "x/2 semantics only match PyTorch for floating dtypes"
    )

    HW = H * W
    dsize = jnp.dtype(x.dtype).itemsize
    bn, T = _choose_tiling(N, HW, dsize)
    grid = (pl.cdiv(N, bn), pl.cdiv(HW, T))

    x_flat = x.reshape(N, 1, HW)   # free view: channel stays contiguous

    out_flat = pl.pallas_call(
        _scale_shift_expand_kernel,
        out_shape=jax.ShapeDtypeStruct((N, 3, HW), x.dtype),
        grid_spec=pl.GridSpec(
            grid=grid,
            in_specs=[
                pl.BlockSpec((bn, 1, T), lambda n, s: (n, 0, s)),
            ],
            out_specs=pl.BlockSpec((bn, 3, T), lambda n, s: (n, 0, s)),
        ),
        compiler_params=pltpu.CompilerParams(
            dimension_semantics=("parallel", "parallel"),
        ),
        cost_estimate=pl.CostEstimate(
            flops=2 * N * HW,                       # one mul + one add / elem
            transcendentals=0,
            bytes_accessed=4 * N * HW * dsize,      # read 1x, write 3x
        ),
    )(x_flat)

    return out_flat.reshape(N, 3, H, W)


if __name__ == "__main__":
    key = jax.random.PRNGKey(0)
    # Small shape consistent with the module: batch=2, 1 channel, 16x16 spatial.
    x = jax.random.normal(key, (2, 1, 16, 16), dtype=jnp.float32)

    out = robustbench_classifier_inputs(x)
    out = jax.block_until_ready(out)

    # Reference check in plain JAX (mirrors the PyTorch semantics).
    ref = jnp.broadcast_to(x / 2.0 + 0.5, (2, 3, 16, 16))
    assert out.shape == (2, 3, 16, 16)
    assert out.dtype == x.dtype
    assert jnp.allclose(out, ref, atol=1e-6), "mismatch vs reference"

    print("KERNEL_OK")
</pallas_src>

<mosaic_0001>
module attributes {stable_mosaic.version = 11 : i64} {
  func.func @_scale_shift_expand_kernel(%arg0: i32, %arg1: i32, %arg2: memref<1x1x256xf32, #tpu.memory_space<vmem>>, %arg3: memref<1x3x256xf32, #tpu.memory_space<vmem>>) attributes {dimension_semantics = [#tpu.dimension_semantics<parallel>, #tpu.dimension_semantics<parallel>], iteration_bounds = array<i64: 2, 1>, scalar_prefetch = 0 : i64, scratch_operands = 0 : i64, tpu.core_type = #tpu.core_type<tc>, window_params = [{transform_indices = @transform_0, window_bounds = array<i64: 1, 1, 256>}, {transform_indices = @transform_1, window_bounds = array<i64: 1, 3, 256>}]} {
    %c0 = arith.constant 0 : index
    %c0_0 = arith.constant 0 : index
    %c0_1 = arith.constant 0 : index
    %0 = vector.load %arg2[%c0, %c0_0, %c0_1] : memref<1x1x256xf32, #tpu.memory_space<vmem>>, vector<1x1x256xf32>
    %cst = arith.constant 5.000000e-01 : f32
    %1 = vector.broadcast %cst : f32 to vector<1x1x256xf32>
    %2 = arith.mulf %0, %1 : vector<1x1x256xf32>
    %cst_2 = arith.constant 5.000000e-01 : f32
    %3 = vector.broadcast %cst_2 : f32 to vector<1x1x256xf32>
    %4 = arith.addf %2, %3 : vector<1x1x256xf32>
    %c0_3 = arith.constant 0 : index
    %c0_4 = arith.constant 0 : index
    %c0_5 = arith.constant 0 : index
    %5 = vector.load %arg3[%c0_3, %c0_4, %c0_5] : memref<1x3x256xf32, #tpu.memory_space<vmem>>, vector<1x1x256xf32>
    tpu.vector_store %arg3[%c0_3, %c0_4, %c0_5], %4 {strides = array<i32>} : memref<1x3x256xf32, #tpu.memory_space<vmem>>, vector<1x1x256xf32>,
    %c0_6 = arith.constant 0 : index
    %c1 = arith.constant 1 : index
    %c0_7 = arith.constant 0 : index
    %6 = vector.load %arg3[%c0_6, %c1, %c0_7] : memref<1x3x256xf32, #tpu.memory_space<vmem>>, vector<1x1x256xf32>
    tpu.vector_store %arg3[%c0_6, %c1, %c0_7], %4 {strides = array<i32>} : memref<1x3x256xf32, #tpu.memory_space<vmem>>, vector<1x1x256xf32>,
    %c0_8 = arith.constant 0 : index
    %c2 = arith.constant 2 : index
    %c0_9 = arith.constant 0 : index
    %7 = vector.load %arg3[%c0_8, %c2, %c0_9] : memref<1x3x256xf32, #tpu.memory_space<vmem>>, vector<1x1x256xf32>
    tpu.vector_store %arg3[%c0_8, %c2, %c0_9], %4 {strides = array<i32>} : memref<1x3x256xf32, #tpu.memory_space<vmem>>, vector<1x1x256xf32>,
    return
  }
  func.func @transform_0(%arg0: i32, %arg1: i32) -> (i32, i32, i32) {
    %c0_i32 = arith.constant 0 : i32
    %c0_i32_0 = arith.constant 0 : i32
    return %arg0, %c0_i32, %arg1 : i32, i32, i32
  }
  func.func @transform_1(%arg0: i32, %arg1: i32) -> (i32, i32, i32) {
    %c0_i32 = arith.constant 0 : i32
    %c0_i32_0 = arith.constant 0 : i32
    return %arg0, %c0_i32, %arg1 : i32, i32, i32
  }
}

</mosaic_0001>

<llo_original>
// kernel: tpu_custom_call.1
$region0: #{tpu_custom_call.1}
  #allocation0 [shape = 'u32[]', space=smem, size = 0x4, offset = 0x4, fixed_abs, tag = 'smem constant byte address 0x4 - core index']
  #allocation1 [shape = 'u32[144,128]{1,0:T(1,128)}', space=vmem, size = 0x12000, scoped, tag = 'internal scratch']
  %s0 = inlined_call_operand.hbm [shape: f32[2,1,256], index: 0, kind: input, shape index: {}]
  %s1 = inlined_call_operand.vmem [shape: f32[2,3,256], index: 1, kind: output, shape index: {}]
  %s2 = sld [smem:[#allocation0]]
  $region41: #{tpu_custom_call.1} parent=0
    _
  %s4 = ssub.s32 1, %s2
  %s5 = scalar_select 0, %s4, %s2
  $region1: #{tpu_custom_call.1} parent=0
    #allocation2 [shape = 'u8[2048]{0}', space=vmem, size = 0x800, scoped, tag = 'input window, operand 0']
    #allocation3 [shape = 's32[2]{0}', space=sflag, size = 0x8, scoped, tag = 'scoped memory for tpu_custom_call.1']
    %6 = vsyncpa [#allocation3], 0
    %s7 = scalar_lea.sflag [#allocation3], 1
    %8 = vsyncpa %s7, 0
    loop: start=0, step=1, limit=4
    $region2: #{tpu_custom_call.1} parent=1 // loop_pre_header
      _
    $region3: #{tpu_custom_call.1} parent=1 // loop_header
      %s10 = sphi 0, %s14
      %p11 = scmp.ge.s32.totalorder %s10, 4
      %s17 = sphi 0, %s29
      %s18 = sphi 0, %s25
      %s19 = sphi 0, %s17
      %s20 = sphi 0, %s18
      %s21 = sphi 0, %s19
      %s22 = sphi 0, %s20
      %s34 = sphi 0, %s36
      %s37 = sphi 0, %s34
      %s38 = sphi 0, %s37
      %s54 = sphi 0, %s38
      %s62 = sphi 0, %s64
      %s65 = sphi 0, %s62
      %s66 = sphi 0, %s65
      %s82 = sphi 0, %s66
    $region4: #{tpu_custom_call.1} parent=1 // loop_header_branch
      %13 = sbr.rel (%p11) target = $region8
    $region5: #{tpu_custom_call.1} parent=1 // loop_body
      %s15 = ssub.s32 %s10, 1
      %s16 = ssub.s32 %s10, 2
      %s23 = sadd.s32 1, %s18
      %p24 = scmp.ge.s32.totalorder %s23, 1
      %s25 = scalar_select %p24, 0, %s23
      %s26 = sadd.s32 1, %s17
      %s27 = scalar_select %p24, %s26, %s17
      %p28 = scmp.ge.s32.totalorder %s27, 2
      %s29 = scalar_select %p28, 0, %s27
      %s30 = ssub.s32 %s17, %s29
      %s31 = ssub.s32 %s18, %s25
      %s32 = sor.u32 %s30, %s31
      %p33 = scmp.eq.s32.totalorder %s32, 0
      %s35 = sadd.s32 %s34, 1
      %s36 = scalar_select %p33, %s34, %s35
      %p39 = pneg %p33
      %p40 = scmp.eq.s32.totalorder %s10, 1
      %p41 = por %p39, %p40
      %p42 = scmp.ne.s32.totalorder %s34, %s37
      %p43 = scmp.eq.s32.totalorder %s10, 0
      %p44 = por %p42, %p43
      %p45 = scmp.ne.s32.totalorder %s34, %s37
      %p46 = scmp.eq.s32.totalorder %s15, 1
      %p47 = por %p45, %p46
      %p48 = scmp.ne.s32.totalorder %s37, %s38
      %p49 = scmp.eq.s32.totalorder %s15, 0
      %p50 = por %p48, %p49
      %p51 = scmp.ne.s32.totalorder %s37, %s38
      %p52 = scmp.eq.s32.totalorder %s16, 1
      %p53 = por %p51, %p52
      %p55 = scmp.ne.s32.totalorder %s38, %s54
      %p56 = scmp.eq.s32.totalorder %s16, 0
      %p57 = por %p55, %p56
      %s58 = ssub.s32 %s17, %s29
      %s59 = ssub.s32 %s18, %s25
      %s60 = sor.u32 %s58, %s59
      %p61 = scmp.eq.s32.totalorder %s60, 0
      %s63 = sadd.s32 %s62, 1
      %s64 = scalar_select %p61, %s62, %s63
      %p67 = pneg %p61
      %p68 = scmp.eq.s32.totalorder %s10, 1
      %p69 = por %p67, %p68
      %p70 = scmp.ne.s32.totalorder %s62, %s65
      %p71 = scmp.eq.s32.totalorder %s10, 0
      %p72 = por %p70, %p71
      %p73 = scmp.ne.s32.totalorder %s62, %s65
      %p74 = scmp.eq.s32.totalorder %s15, 1
      %p75 = por %p73, %p74
      %p76 = scmp.ne.s32.totalorder %s65, %s66
      %p77 = scmp.eq.s32.totalorder %s15, 0
      %p78 = por %p76, %p77
      %p79 = scmp.ne.s32.totalorder %s65, %s66
      %p80 = scmp.eq.s32.totalorder %s16, 1
      %p81 = por %p79, %p80
      %p83 = scmp.ne.s32.totalorder %s66, %s82
      %p84 = scmp.eq.s32.totalorder %s16, 0
      %p85 = por %p83, %p84
      %p86 = scmp.le.s32.totalorder 1, %s10
      %p87 = scmp.lt.s32.totalorder %s10, 3
      %p88 = pnand %p86, %p87
      %p89 = pneg %p88
      // Predicated region
      $region9: #{tpu_custom_call.1} parent=5 // pred_check
        _
      $region10: #{tpu_custom_call.1} parent=5 // pred_check_branch
        %91 = sbr.rel (%p88) target = $region12
      $region11: #{tpu_custom_call.1} parent=5 // pred_region
        %s92 = ssub.s32 %s10, 1
      $region12: #{tpu_custom_call.1} parent=5 // pred_fallthru
        _
      %p93 = scmp.lt.s32.totalorder %s10, 2
      // Predicated region
      $region13: #{tpu_custom_call.1} parent=5 // pred_check
        %p94 = pneg %p93
      $region14: #{tpu_custom_call.1} parent=5 // pred_check_branch
        %96 = sbr.rel (%p94) target = $region16
      $region15: #{tpu_custom_call.1} parent=5 // pred_region
        // Predicated region
        $region17: #{tpu_custom_call.1} parent=15 // pred_check
          %p97 = pneg %p44
        $region18: #{tpu_custom_call.1} parent=15 // pred_check_branch
          %99 = sbr.rel (%p97) target = $region20
        $region19: #{tpu_custom_call.1} parent=15 // pred_region
          %s100 = sand.u32 %s34, 1
          %s101 = scalar_lea.sflag [#allocation3], %s100
          %s102 = sand.u32 %s34, 1
          %s103 = smul.addr %s102, 2
          %s104 = scalar_lea.vmem [#allocation2], %s103
          %s105 = smul.u32 2, %s18
          %s107 = ssub.s32 32, 32
          %108 = vsyncadd %s101, %s107
          %s109 = smul.addr %s17, 2
          %s110 = sadd.s32 %s105, %s109
          %s111 = smul.addr %s110, 16
          %s112 = scalar_lea.hbm %s0, %s111
          %s114 = sshll.u32 %s104, 4
          %s115 = int_to_ptr.vmem [resolvable:$true] %s114
          %117 = dma.hbm_to_vmem [thread:$0]  %s112, 32, %s115, %s101
        $region20: #{tpu_custom_call.1} parent=15 // pred_fallthru
          _
      $region16: #{tpu_custom_call.1} parent=5 // pred_fallthru
        _
      %p118 = scmp.le.s32.totalorder 1, %s10
      %p119 = scmp.lt.s32.totalorder %s10, 3
      %p120 = pnand %p118, %p119
      %p121 = pneg %p120
      // Predicated region
      $region21: #{tpu_custom_call.1} parent=5 // pred_check
        _
      $region22: #{tpu_custom_call.1} parent=5 // pred_check_branch
        %123 = sbr.rel (%p120) target = $region24
      $region23: #{tpu_custom_call.1} parent=5 // pred_region
        %s124 = ssub.s32 %s10, 1
        %s125 = sand.u32 %s37, 1
        %s126 = scalar_lea.sflag [#allocation3], %s125
        %s127 = sand.u32 %s37, 1
        %s128 = smul.addr %s127, 2
        %s129 = scalar_lea.vmem [#allocation2], %s128
        // Predicated region
        $region25: #{tpu_custom_call.1} parent=23 // pred_check
          %p130 = pneg %p50
        $region26: #{tpu_custom_call.1} parent=23 // pred_check_branch
          %132 = sbr.rel (%p130) target = $region28
        $region27: #{tpu_custom_call.1} parent=23 // pred_region
          %133 = dma.done %s126, 32
        $region28: #{tpu_custom_call.1} parent=23 // pred_fallthru
          _
        %s134 = sand.u32 %s37, 1
        %s135 = scalar_lea.sflag [#allocation3], %s134
        %s136 = sand.u32 %s37, 1
        %s137 = smul.addr %s136, 2
        %s138 = scalar_lea.vmem [#allocation2], %s137
        %p139 = pneg %p50
        %p140 = pneg %p47
        %p141 = pneg %p78
        %p142 = pneg %p75
        %s143 = smul.u32 2, %s20
        %p144 = scmp.lt.s32.totalorder %s19, 1
        %s145 = scalar_select %p144, %s19, 1
        %p146 = scmp.lt.s32.totalorder %s143, 1
        %s147 = scalar_select %p146, %s143, 1
        %s148 = smul.addr %s145, 2
        %s149 = sadd.s32 %s147, %s148
        %s150 = smul.addr %s149, 4
        %s151 = scalar_lea.vmem %s1, %s150
        %s152 = smul.u32 2, %s20
        %s153 = smul.u32 2, %s20
        %p154 = scmp.lt.s32.totalorder %s19, 1
        %s155 = scalar_select %p154, %s19, 1
        %p156 = scmp.lt.s32.totalorder %s153, 1
        %s157 = scalar_select %p156, %s153, 1
        %s158 = smul.addr %s155, 2
        %s159 = sadd.s32 %s157, %s158
        %s160 = smul.addr %s159, 4
        %s161 = scalar_lea.vmem %s1, %s160
        %s162 = smul.u32 2, %s20
        %v163 = vld [vmem:[%s129] sm:$0x3]
        %v164 = vmul.f32 %v163, 0.5
        %v165 = vadd.f32 %v164, 0.5
        %v166 = vlaneseq
        %vm167 = vcmp.ge.s32.totalorder %v166, 0
        %vm168 = vcmp.lt.s32.totalorder %v166, 256
        %vm169 = vmand %vm167, %vm168
        %170 = vst.msk [vmem:[%s161] ss:$4 sm:$0x3] %vm169, %v165
        %s171 = scalar_lea.vmem %s161, 1
        %172 = vst.msk [vmem:[%s171] ss:$4 sm:$0x3] %vm169, %v165
        %s173 = scalar_lea.vmem %s161, 2
        %174 = vst.msk [vmem:[%s173] ss:$4 sm:$0x3] %vm169, %v165
        %s175 = smul.u32 2, %s20
        %p176 = scmp.lt.s32.totalorder %s19, 1
        %s177 = scalar_select %p176, %s19, 1
        %p178 = scmp.lt.s32.totalorder %s175, 1
        %s179 = scalar_select %p178, %s175, 1
        %s180 = smul.addr %s177, 2
        %s181 = sadd.s32 %s179, %s180
        %s182 = smul.addr %s181, 4
        %s183 = scalar_lea.vmem %s1, %s182
        // Predicated region
        $region29: #{tpu_custom_call.1} parent=23 // pred_check
          %p184 = pneg %p75
        $region30: #{tpu_custom_call.1} parent=23 // pred_check_branch
          %186 = sbr.rel (%p184) target = $region32
        $region31: #{tpu_custom_call.1} parent=23 // pred_region
          %s187 = smul.u32 2, %s20
        $region32: #{tpu_custom_call.1} parent=23 // pred_fallthru
          _
      $region24: #{tpu_custom_call.1} parent=5 // pred_fallthru
        _
      %p188 = scmp.le.s32.totalorder 2, %s10
      // Predicated region
      $region33: #{tpu_custom_call.1} parent=5 // pred_check
        %p189 = pneg %p188
      $region34: #{tpu_custom_call.1} parent=5 // pred_check_branch
        %191 = sbr.rel (%p189) target = $region36
      $region35: #{tpu_custom_call.1} parent=5 // pred_region
        %s192 = ssub.s32 %s10, 2
        // Predicated region
        $region37: #{tpu_custom_call.1} parent=35 // pred_check
          %p193 = pneg %p81
        $region38: #{tpu_custom_call.1} parent=35 // pred_check_branch
          %195 = sbr.rel (%p193) target = $region40
        $region39: #{tpu_custom_call.1} parent=35 // pred_region
          %s196 = smul.u32 2, %s22
          %p197 = scmp.lt.s32.totalorder %s21, 1
          %s198 = scalar_select %p197, %s21, 1
          %p199 = scmp.lt.s32.totalorder %s196, 1
          %s200 = scalar_select %p199, %s196, 1
          %s201 = smul.addr %s198, 2
          %s202 = sadd.s32 %s200, %s201
          %s203 = smul.addr %s202, 4
          %s204 = scalar_lea.vmem %s1, %s203
        $region40: #{tpu_custom_call.1} parent=35 // pred_fallthru
          _
      $region36: #{tpu_custom_call.1} parent=5 // pred_fallthru
        _
    $region6: #{tpu_custom_call.1} parent=1 // loop_footer
      %s14 = sadd.s32 1, %s10
    $region7: #{tpu_custom_call.1} parent=1 // loop_footer_branch
      %9 = sbr.rel target = $region3
    $region8: #{tpu_custom_call.1} parent=1 // loop_exit
      _
    %205 = vsyncpa [#allocation3], 1
    %s206 = scalar_lea.sflag [#allocation3], 1
    %207 = vsyncpa %s206, 1

</llo_original>
